<compile_context>
chip_gen: v7x
topology: tpu7x:2x2x1
jax: 0.10.0
libtpu: 0.0.40
codegen_flags: <defaults>
</compile_context>

<pallas_src>
import functools

import jax
import jax.numpy as jnp
from jax.experimental import pallas as pl
from jax.experimental.pallas import tpu as pltpu

_LANES = 128


def _vmem_plan():
    """Returns (tile_budget_bytes, vmem_limit_bytes, want_multi_core_split)."""
    try:
        cap = int(pltpu.get_tpu_info().vmem_capacity_bytes)
    except Exception:
        cap = 64 << 20  # conservative fallback (v7x per-TC size)
    if cap >= (96 << 20):
        # v5e / v6e: 128 MiB physical VMEM, one TensorCore per chip.
        return 40 << 20, 80 << 20, False
    # v7x-like: 64 MiB per TensorCore, 2 TCs per chip -> want >= 2 parallel steps.
    return 14 << 20, 48 << 20, True


def _pick_block_c(n_rows, c, itemsize, budget_bytes, want_multi_core):
    """Largest 128-multiple C tile whose pipelined working set fits the budget."""
    # Per 128-lane column: x + y double-buffered (2 arrays * 2 buffers * itemsize)
    # plus ~3 live f32 temporaries (x_f32 / centered / y) inside the kernel body.
    per_col = n_rows * (4 * itemsize + 3 * 4)
    max_tc = (budget_bytes // max(per_col, 1)) // _LANES * _LANES
    if max_tc < _LANES:
        # TODO(synk): implement the N-reduction grid axis for very large batches.
        raise ValueError(
            f"Batch N={n_rows} too large for a single-block batch reduction: a "
            f"minimal (N, 128) tile needs ~{(per_col * _LANES) >> 20} MiB VMEM, "
            f"budget is {budget_bytes >> 20} MiB.")
    c_up = pl.cdiv(c, _LANES) * _LANES
    tc = min(c_up, max_tc)
    if want_multi_core:
        # v7x: ensure >= 2 steps on the 'parallel' axis so both TCs get work
        # (only possible when C spans more than one 128-lane group).
        while tc > _LANES and pl.cdiv(c, tc) < 2:
            tc = max(_LANES, (tc // 2 + _LANES - 1) // _LANES * _LANES)
    return tc


def _sep_bn_kernel(t_ref, x_ref, w_ref, b_ref, rm_ref, rv_ref,
                   y_ref, rm_out_ref, rv_out_ref,
                   *, eps, momentum, n_total):
    # t_ref (the timestep) is consumed only by the index_maps.
    del t_ref

    x = x_ref[...].astype(jnp.float32)                        # (N, TC)
    inv_n = 1.0 / n_total

    # Two-pass batch statistics: per-lane only, so garbage OOB tail lanes (from
    # the masked partial last block) stay self-contained and are never stored.
    mean = jnp.sum(x, axis=0, keepdims=True) * inv_n          # (1, TC)
    centered = x - mean
    var = jnp.sum(centered * centered, axis=0, keepdims=True) * inv_n

    # Fold affine into scale/shift: y = x * scale + shift  (2 VPU ops / element).
    inv_std = jax.lax.rsqrt(var + eps)                        # (1, TC)
    scale = w_ref[...].astype(jnp.float32) * inv_std          # (1, TC)
    shift = b_ref[...].astype(jnp.float32) - mean * scale     # (1, TC)
    y_ref[...] = (x * scale + shift).astype(y_ref.dtype)

    # Running-stat update for the selected timestep row (PyTorch uses the
    # unbiased variance for running_var).
    unbias = n_total / (n_total - 1.0)
    one_minus_m = 1.0 - momentum
    rm_out_ref[...] = (one_minus_m * rm_ref[...].astype(jnp.float32)
                       + momentum * mean[None]).astype(rm_out_ref.dtype)
    rv_out_ref[...] = (one_minus_m * rv_ref[...].astype(jnp.float32)
                       + momentum * (var[None] * unbias)).astype(rv_out_ref.dtype)


def separated_batch_norm_1d(x, weight, bias, running_mean_all, running_var_all,
                            time, *, eps=1e-3, momentum=0.1):
    """Training-mode forward of SeparatedBatchNorm1d.

    x:              (N, C)
    weight, bias:   (C,)
    running_*_all:  (max_length, C)  -- per-timestep buffers
    time:           int (traced or Python); clamped to max_length - 1

    Returns (y, new_running_mean_all, new_running_var_all); the running buffers
    are returned in full with only the selected timestep row updated.
    """
    N, C = x.shape
    max_length = running_mean_all.shape[0]
    if N < 2:
        raise ValueError("Expected more than 1 value per channel when training "
                         f"(got batch size {N}).")

    budget, vmem_limit, want_mc = _vmem_plan()
    block_c = _pick_block_c(N, C, jnp.dtype(x.dtype).itemsize, budget, want_mc)
    grid = (pl.cdiv(C, block_c),)

    # Unit middle dim so the per-timestep row block is (1, 1, TC): the last two
    # block dims are (full-dim 1, 128-multiple) -> clean layout for a dynamic row
    # pick.  Adding a unit dim is a free reshape (no HBM copy).
    rm3 = running_mean_all.reshape(max_length, 1, C)
    rv3 = running_var_all.reshape(max_length, 1, C)
    w2 = weight.reshape(1, C)
    b2 = bias.reshape(1, C)

    # Traced, clamped timestep -> one compiled kernel serves every timestep.
    t_arr = jnp.clip(jnp.asarray(time, jnp.int32), 0, max_length - 1).reshape((1,))

    kernel = functools.partial(_sep_bn_kernel, eps=float(eps),
                               momentum=float(momentum), n_total=int(N))

    x_spec = pl.BlockSpec((N, block_c), lambda j, ts: (0, j))
    row_spec = pl.BlockSpec((1, block_c), lambda j, ts: (0, j))
    stat_spec = pl.BlockSpec((1, 1, block_c), lambda j, ts: (ts[0], 0, j))

    y, rm_new, rv_new = pl.pallas_call(
        kernel,
        grid_spec=pltpu.PrefetchScalarGridSpec(
            num_scalar_prefetch=1,
            grid=grid,
            in_specs=[x_spec, row_spec, row_spec, stat_spec, stat_spec],
            out_specs=[x_spec, stat_spec, stat_spec],
        ),
        out_shape=(
            jax.ShapeDtypeStruct((N, C), x.dtype),
            jax.ShapeDtypeStruct((max_length, 1, C), running_mean_all.dtype),
            jax.ShapeDtypeStruct((max_length, 1, C), running_var_all.dtype),
        ),
        # Input indices count the scalar-prefetch operand: (t, x, w, b, rm, rv).
        input_output_aliases={4: 1, 5: 2},
        compiler_params=pltpu.CompilerParams(
            dimension_semantics=("parallel",),
            vmem_limit_bytes=vmem_limit,
        ),
    )(t_arr, x, w2, b2, rm3, rv3)

    return (y,
            rm_new.reshape(max_length, C),
            rv_new.reshape(max_length, C))


if __name__ == "__main__":
    key = jax.random.PRNGKey(0)
    k_x, k_w = jax.random.split(key)

    batch = 8
    num_features = 32          # deliberately NOT a multiple of 128: exercises masking
    max_length = 8
    time = 3
    eps, momentum = 1e-3, 0.1

    x = jax.random.normal(k_x, (batch, num_features), dtype=jnp.float32)
    # Init matching module.reset_parameters: weight ~ U[0,1), bias = 0,
    # running_mean_i = 0, running_var_i = 1.
    weight = jax.random.uniform(k_w, (num_features,), dtype=jnp.float32)
    bias = jnp.zeros((num_features,), dtype=jnp.float32)
    rm_all = jnp.zeros((max_length, num_features), dtype=jnp.float32)
    rv_all = jnp.ones((max_length, num_features), dtype=jnp.float32)

    fn = jax.jit(functools.partial(separated_batch_norm_1d,
                                   eps=eps, momentum=momentum))

    y, new_rm, new_rv = fn(x, weight, bias, rm_all, rv_all, time)
    jax.block_until_ready((y, new_rm, new_rv))

    # Pure-JAX reference (training-mode batch norm + PyTorch running-stat update).
    mean = jnp.mean(x, axis=0, keepdims=True)
    var_b = jnp.mean((x - mean) ** 2, axis=0, keepdims=True)
    y_ref = (x - mean) / jnp.sqrt(var_b + eps) * weight + bias
    var_u = var_b * batch / (batch - 1)
    exp_rm = rm_all.at[time].set((1 - momentum) * rm_all[time] + momentum * mean[0])
    exp_rv = rv_all.at[time].set((1 - momentum) * rv_all[time] + momentum * var_u[0])

    assert jnp.allclose(y, y_ref, atol=3e-5, rtol=3e-5), "output mismatch"
    assert jnp.allclose(new_rm, exp_rm, atol=3e-5, rtol=3e-5), "running_mean mismatch"
    assert jnp.allclose(new_rv, exp_rv, atol=3e-5, rtol=3e-5), "running_var mismatch"

    # time >= max_length clamps to the last row; same compiled kernel (time traced).
    _, rm2, rv2 = fn(x, weight, bias, rm_all, rv_all, max_length + 5)
    jax.block_until_ready(rm2)
    assert jnp.allclose(rm2[max_length - 1], momentum * mean[0],
                        atol=3e-5, rtol=3e-5)
    assert jnp.allclose(rv2[max_length - 1],
                        (1 - momentum) + momentum * var_u[0], atol=3e-5, rtol=3e-5)

    print("KERNEL_OK")
</pallas_src>

<mosaic_0001>
module attributes {stable_mosaic.version = 11 : i64} {
  func.func @_sep_bn_kernel(%arg0: i32, %arg1: memref<1xi32, #tpu.memory_space<smem>>, %arg2: memref<8x128xf32, #tpu.memory_space<vmem>>, %arg3: memref<1x128xf32, #tpu.memory_space<vmem>>, %arg4: memref<1x128xf32, #tpu.memory_space<vmem>>, %arg5: memref<1x1x128xf32, #tpu.memory_space<vmem>>, %arg6: memref<1x1x128xf32, #tpu.memory_space<vmem>>, %arg7: memref<8x128xf32, #tpu.memory_space<vmem>>, %arg8: memref<1x1x128xf32, #tpu.memory_space<vmem>>, %arg9: memref<1x1x128xf32, #tpu.memory_space<vmem>>) attributes {dimension_semantics = [#tpu.dimension_semantics<parallel>], iteration_bounds = array<i64: 1>, scalar_prefetch = 1 : i64, scratch_operands = 0 : i64, tpu.core_type = #tpu.core_type<tc>, window_params = [{transform_indices = @transform_0, window_bounds = array<i64: 8, 128>}, {transform_indices = @transform_1, window_bounds = array<i64: 1, 128>}, {transform_indices = @transform_2, window_bounds = array<i64: 1, 128>}, {transform_indices = @transform_3, window_bounds = array<i64: 1, 1, 128>}, {transform_indices = @transform_4, window_bounds = array<i64: 1, 1, 128>}, {transform_indices = @transform_5, window_bounds = array<i64: 8, 128>}, {transform_indices = @transform_6, window_bounds = array<i64: 1, 1, 128>}, {transform_indices = @transform_7, window_bounds = array<i64: 1, 1, 128>}]} {
    %c0 = arith.constant 0 : index
    %c0_0 = arith.constant 0 : index
    %0 = vector.load %arg2[%c0, %c0_0] : memref<8x128xf32, #tpu.memory_space<vmem>>, vector<8x128xf32>
    %cst = arith.constant dense<0.000000e+00> : vector<128xf32>
    %1 = vector.multi_reduction <add>, %0, %cst [0] : vector<8x128xf32> to vector<128xf32>
    %2 = vector.shape_cast %1 : vector<128xf32> to vector<1x128xf32>
    %cst_1 = arith.constant 1.250000e-01 : f32
    %3 = vector.broadcast %cst_1 : f32 to vector<1x128xf32>
    %4 = arith.mulf %2, %3 : vector<1x128xf32>
    %5 = vector.broadcast %4 : vector<1x128xf32> to vector<8x128xf32>
    %6 = arith.subf %0, %5 : vector<8x128xf32>
    %7 = arith.mulf %6, %6 : vector<8x128xf32>
    %cst_2 = arith.constant dense<0.000000e+00> : vector<128xf32>
    %8 = vector.multi_reduction <add>, %7, %cst_2 [0] : vector<8x128xf32> to vector<128xf32>
    %9 = vector.shape_cast %8 : vector<128xf32> to vector<1x128xf32>
    %cst_3 = arith.constant 1.250000e-01 : f32
    %10 = vector.broadcast %cst_3 : f32 to vector<1x128xf32>
    %11 = arith.mulf %9, %10 : vector<1x128xf32>
    %cst_4 = arith.constant 1.000000e-03 : f32
    %12 = vector.broadcast %cst_4 : f32 to vector<1x128xf32>
    %13 = arith.addf %11, %12 : vector<1x128xf32>
    %14 = math.rsqrt %13 : vector<1x128xf32>
    %c0_5 = arith.constant 0 : index
    %c0_6 = arith.constant 0 : index
    %15 = vector.load %arg3[%c0_5, %c0_6] : memref<1x128xf32, #tpu.memory_space<vmem>>, vector<1x128xf32>
    %16 = arith.mulf %15, %14 : vector<1x128xf32>
    %c0_7 = arith.constant 0 : index
    %c0_8 = arith.constant 0 : index
    %17 = vector.load %arg4[%c0_7, %c0_8] : memref<1x128xf32, #tpu.memory_space<vmem>>, vector<1x128xf32>
    %18 = arith.mulf %4, %16 : vector<1x128xf32>
    %19 = arith.subf %17, %18 : vector<1x128xf32>
    %20 = vector.broadcast %16 : vector<1x128xf32> to vector<8x128xf32>
    %21 = arith.mulf %0, %20 : vector<8x128xf32>
    %22 = vector.broadcast %19 : vector<1x128xf32> to vector<8x128xf32>
    %23 = arith.addf %21, %22 : vector<8x128xf32>
    %c0_9 = arith.constant 0 : index
    %c0_10 = arith.constant 0 : index
    %24 = vector.load %arg7[%c0_9, %c0_10] : memref<8x128xf32, #tpu.memory_space<vmem>>, vector<8x128xf32>
    tpu.vector_store %arg7[%c0_9, %c0_10], %23 {strides = array<i32>} : memref<8x128xf32, #tpu.memory_space<vmem>>, vector<8x128xf32>,
    %c0_11 = arith.constant 0 : index
    %c0_12 = arith.constant 0 : index
    %c0_13 = arith.constant 0 : index
    %25 = vector.load %arg5[%c0_11, %c0_12, %c0_13] : memref<1x1x128xf32, #tpu.memory_space<vmem>>, vector<1x1x128xf32>
    %cst_14 = arith.constant 0.899999976 : f32
    %26 = vector.broadcast %cst_14 : f32 to vector<1x1x128xf32>
    %27 = arith.mulf %26, %25 : vector<1x1x128xf32>
    %28 = vector.shape_cast %4 : vector<1x128xf32> to vector<1x1x128xf32>
    %cst_15 = arith.constant 1.000000e-01 : f32
    %29 = vector.broadcast %cst_15 : f32 to vector<1x1x128xf32>
    %30 = arith.mulf %29, %28 : vector<1x1x128xf32>
    %31 = arith.addf %27, %30 : vector<1x1x128xf32>
    %c0_16 = arith.constant 0 : index
    %c0_17 = arith.constant 0 : index
    %c0_18 = arith.constant 0 : index
    %32 = vector.load %arg8[%c0_16, %c0_17, %c0_18] : memref<1x1x128xf32, #tpu.memory_space<vmem>>, vector<1x1x128xf32>
    tpu.vector_store %arg8[%c0_16, %c0_17, %c0_18], %31 {strides = array<i32>} : memref<1x1x128xf32, #tpu.memory_space<vmem>>, vector<1x1x128xf32>,
    %c0_19 = arith.constant 0 : index
    %c0_20 = arith.constant 0 : index
    %c0_21 = arith.constant 0 : index
    %33 = vector.load %arg6[%c0_19, %c0_20, %c0_21] : memref<1x1x128xf32, #tpu.memory_space<vmem>>, vector<1x1x128xf32>
    %cst_22 = arith.constant 0.899999976 : f32
    %34 = vector.broadcast %cst_22 : f32 to vector<1x1x128xf32>
    %35 = arith.mulf %34, %33 : vector<1x1x128xf32>
    %36 = vector.shape_cast %11 : vector<1x128xf32> to vector<1x1x128xf32>
    %cst_23 = arith.constant 1.14285719 : f32
    %37 = vector.broadcast %cst_23 : f32 to vector<1x1x128xf32>
    %38 = arith.mulf %36, %37 : vector<1x1x128xf32>
    %cst_24 = arith.constant 1.000000e-01 : f32
    %39 = vector.broadcast %cst_24 : f32 to vector<1x1x128xf32>
    %40 = arith.mulf %39, %38 : vector<1x1x128xf32>
    %41 = arith.addf %35, %40 : vector<1x1x128xf32>
    %c0_25 = arith.constant 0 : index
    %c0_26 = arith.constant 0 : index
    %c0_27 = arith.constant 0 : index
    %42 = vector.load %arg9[%c0_25, %c0_26, %c0_27] : memref<1x1x128xf32, #tpu.memory_space<vmem>>, vector<1x1x128xf32>
    tpu.vector_store %arg9[%c0_25, %c0_26, %c0_27], %41 {strides = array<i32>} : memref<1x1x128xf32, #tpu.memory_space<vmem>>, vector<1x1x128xf32>,
    return
  }
  func.func @transform_0(%arg0: i32, %arg1: memref<1xi32, #tpu.memory_space<smem>>) -> (i32, i32) {
    %c0_i32 = arith.constant 0 : i32
    %c0_i32_0 = arith.constant 0 : i32
    return %c0_i32, %arg0 : i32, i32
  }
  func.func @transform_1(%arg0: i32, %arg1: memref<1xi32, #tpu.memory_space<smem>>) -> (i32, i32) {
    %c0_i32 = arith.constant 0 : i32
    %c0_i32_0 = arith.constant 0 : i32
    return %c0_i32, %arg0 : i32, i32
  }
  func.func @transform_2(%arg0: i32, %arg1: memref<1xi32, #tpu.memory_space<smem>>) -> (i32, i32) {
    %c0_i32 = arith.constant 0 : i32
    %c0_i32_0 = arith.constant 0 : i32
    return %c0_i32, %arg0 : i32, i32
  }
  func.func @transform_3(%arg0: i32, %arg1: memref<1xi32, #tpu.memory_space<smem>>) -> (i32, i32, i32) {
    %c0 = arith.constant 0 : index
    %0 = memref.load %arg1[%c0] : memref<1xi32, #tpu.memory_space<smem>>
    %c0_i32 = arith.constant 0 : i32
    %c0_i32_0 = arith.constant 0 : i32
    return %0, %c0_i32, %arg0 : i32, i32, i32
  }
  func.func @transform_4(%arg0: i32, %arg1: memref<1xi32, #tpu.memory_space<smem>>) -> (i32, i32, i32) {
    %c0 = arith.constant 0 : index
    %0 = memref.load %arg1[%c0] : memref<1xi32, #tpu.memory_space<smem>>
    %c0_i32 = arith.constant 0 : i32
    %c0_i32_0 = arith.constant 0 : i32
    return %0, %c0_i32, %arg0 : i32, i32, i32
  }
  func.func @transform_5(%arg0: i32, %arg1: memref<1xi32, #tpu.memory_space<smem>>) -> (i32, i32) {
    %c0_i32 = arith.constant 0 : i32
    %c0_i32_0 = arith.constant 0 : i32
    return %c0_i32, %arg0 : i32, i32
  }
  func.func @transform_6(%arg0: i32, %arg1: memref<1xi32, #tpu.memory_space<smem>>) -> (i32, i32, i32) {
    %c0 = arith.constant 0 : index
    %0 = memref.load %arg1[%c0] : memref<1xi32, #tpu.memory_space<smem>>
    %c0_i32 = arith.constant 0 : i32
    %c0_i32_0 = arith.constant 0 : i32
    return %0, %c0_i32, %arg0 : i32, i32, i32
  }
  func.func @transform_7(%arg0: i32, %arg1: memref<1xi32, #tpu.memory_space<smem>>) -> (i32, i32, i32) {
    %c0 = arith.constant 0 : index
    %0 = memref.load %arg1[%c0] : memref<1xi32, #tpu.memory_space<smem>>
    %c0_i32 = arith.constant 0 : i32
    %c0_i32_0 = arith.constant 0 : i32
    return %0, %c0_i32, %arg0 : i32, i32, i32
  }
}

</mosaic_0001>

<llo_original>
// kernel: separated_batch_norm_1d.1
$region0: #{separated_batch_norm_1d.1}
  #allocation0 [shape = 'u32[]', space=smem, size = 0x4, offset = 0x4, fixed_abs, tag = 'smem constant byte address 0x4 - core index']
  #allocation1 [shape = 'u32[144,128]{1,0:T(1,128)}', space=vmem, size = 0x12000, scoped, tag = 'internal scratch']
  #allocation2 [shape = 's32[1]{0}', space=sflag, size = 0x4, scoped, tag = 'scoped memory for separated_batch_norm_1d.1']
  #allocation3 [shape = 's32[1]{0:T(128)S(6)}', space=smem, size = 0x200, scoped, tag = 'prefetched SMEM operand 0']
  %s0 = inlined_call_operand.<no memory space> [shape: s32[1], index: 0, kind: input, shape index: {}]
  %s1 = inlined_call_operand.vmem [shape: f32[8,32], index: 1, kind: input, shape index: {}]
  %s2 = inlined_call_operand.vmem [shape: f32[1,32], index: 2, kind: input, shape index: {}]
  %s3 = inlined_call_operand.vmem [shape: f32[1,32], index: 3, kind: input, shape index: {}]
  %s4 = inlined_call_operand.vmem [shape: f32[8,1,32], index: 4, kind: input, shape index: {}, may-alias: {4,7}]
  %s5 = inlined_call_operand.vmem [shape: f32[8,1,32], index: 5, kind: input, shape index: {}, may-alias: {5,8}]
  %s6 = inlined_call_operand.hbm [shape: f32[8,32], index: 6, kind: output, shape index: {0}]
  %s7 = inlined_call_operand.vmem [shape: f32[8,1,32], index: 7, kind: output, shape index: {1}, may-alias: {4,7}]
  %s8 = inlined_call_operand.vmem [shape: f32[8,1,32], index: 8, kind: output, shape index: {2}, may-alias: {5,8}]
  %9 = xla_tuple %s6, %s7, %s8
  %s10 = sld [smem:[#allocation0]]
  $region46: #{separated_batch_norm_1d.1} parent=0
    _
  %s12 = ssub.s32 1, %s10
  %s13 = scalar_select 0, %s12, %s10
  %14 = sst [smem:[#allocation3]] %s0
  $region1: #{separated_batch_norm_1d.1} parent=0
    #allocation4 [shape = 'u8[4096]{0}', space=vmem, size = 0x1000, scoped, tag = 'output window, operand 0, single buffered']
    #allocation5 [shape = 's32[1]{0}', space=sflag, size = 0x4, scoped, tag = 'scoped memory for separated_batch_norm_1d.1']
    %15 = vsyncpa [#allocation5], 0
    // Predicated region
    $region2: #{separated_batch_norm_1d.1} parent=1 // pred_check
      _
    $region3: #{separated_batch_norm_1d.1} parent=1 // pred_check_branch
      %17 = sbr.rel (0) target = $region5
    $region4: #{separated_batch_norm_1d.1} parent=1 // pred_region
      _
    $region5: #{separated_batch_norm_1d.1} parent=1 // pred_fallthru
      _
    // Predicated region
    $region6: #{separated_batch_norm_1d.1} parent=1 // pred_check
      _
    $region7: #{separated_batch_norm_1d.1} parent=1 // pred_check_branch
      %19 = sbr.rel (0) target = $region9
    $region8: #{separated_batch_norm_1d.1} parent=1 // pred_region
      _
    $region9: #{separated_batch_norm_1d.1} parent=1 // pred_fallthru
      _
    // Predicated region
    $region10: #{separated_batch_norm_1d.1} parent=1 // pred_check
      _
    $region11: #{separated_batch_norm_1d.1} parent=1 // pred_check_branch
      %21 = sbr.rel (0) target = $region13
    $region12: #{separated_batch_norm_1d.1} parent=1 // pred_region
      _
    $region13: #{separated_batch_norm_1d.1} parent=1 // pred_fallthru
      _
    // Predicated region
    $region14: #{separated_batch_norm_1d.1} parent=1 // pred_check
      _
    $region15: #{separated_batch_norm_1d.1} parent=1 // pred_check_branch
      %23 = sbr.rel (0) target = $region17
    $region16: #{separated_batch_norm_1d.1} parent=1 // pred_region
      %s24 = sld [smem:[#allocation3]]
      %p25 = scmp.lt.s32.totalorder %s24, 7
      %s26 = scalar_select %p25, %s24, 7
      %s27 = scalar_lea.vmem %s4, %s26
      %s28 = sld [smem:[#allocation3]]
    $region17: #{separated_batch_norm_1d.1} parent=1 // pred_fallthru
      _
    // Predicated region
    $region18: #{separated_batch_norm_1d.1} parent=1 // pred_check
      _
    $region19: #{separated_batch_norm_1d.1} parent=1 // pred_check_branch
      %30 = sbr.rel (0) target = $region21
    $region20: #{separated_batch_norm_1d.1} parent=1 // pred_region
      %s31 = sld [smem:[#allocation3]]
      %p32 = scmp.lt.s32.totalorder %s31, 7
      %s33 = scalar_select %p32, %s31, 7
      %s34 = scalar_lea.vmem %s5, %s33
      %s35 = sld [smem:[#allocation3]]
    $region21: #{separated_batch_norm_1d.1} parent=1 // pred_fallthru
      _
    %s36 = sld [smem:[#allocation3]]
    %p37 = scmp.lt.s32.totalorder %s36, 7
    %s38 = scalar_select %p37, %s36, 7
    %s39 = scalar_lea.vmem %s4, %s38
    %s40 = sld [smem:[#allocation3]]
    %p41 = scmp.lt.s32.totalorder %s40, 7
    %s42 = scalar_select %p41, %s40, 7
    %s43 = scalar_lea.vmem %s5, %s42
    %s44 = sld [smem:[#allocation3]]
    %p45 = scmp.lt.s32.totalorder %s44, 7
    %s46 = scalar_select %p45, %s44, 7
    %s47 = scalar_lea.vmem %s7, %s46
    %s48 = sld [smem:[#allocation3]]
    %p49 = scmp.lt.s32.totalorder %s48, 7
    %s50 = scalar_select %p49, %s48, 7
    %s51 = scalar_lea.vmem %s8, %s50
    %s52 = sld [smem:[#allocation3]]
    %p53 = scmp.lt.s32.totalorder %s52, 7
    %s54 = scalar_select %p53, %s52, 7
    %s55 = scalar_lea.vmem %s4, %s54
    %s56 = sld [smem:[#allocation3]]
    %s57 = sld [smem:[#allocation3]]
    %p58 = scmp.lt.s32.totalorder %s57, 7
    %s59 = scalar_select %p58, %s57, 7
    %s60 = scalar_lea.vmem %s5, %s59
    %s61 = sld [smem:[#allocation3]]
    %s62 = sld [smem:[#allocation3]]
    %p63 = scmp.lt.s32.totalorder %s62, 7
    %s64 = scalar_select %p63, %s62, 7
    %s65 = scalar_lea.vmem %s7, %s64
    %s66 = sld [smem:[#allocation3]]
    %s67 = sld [smem:[#allocation3]]
    %p68 = scmp.lt.s32.totalorder %s67, 7
    %s69 = scalar_select %p68, %s67, 7
    %s70 = scalar_lea.vmem %s8, %s69
    %s71 = sld [smem:[#allocation3]]
    %v72 = vld [vmem:[%s1] sm:$0xff]
    %v73 = vrot.slane %v72, 4
    %v74 = vadd.f32 %v72, %v73
    %v75 = vrot.slane %v74, 2
    %v76 = vadd.f32 %v74, %v75
    %v77 = vrot.slane %v76, 1
    %v78 = vadd.f32 %v76, %v77
    %v79 = vmul.f32 %v78, 0.125
    %v80 = vsub.f32 %v72, %v79
    %v81 = vmul.f32 %v80, %v80
    %v82 = vrot.slane %v81, 4
    %v83 = vadd.f32 %v81, %v82
    %v84 = vrot.slane %v83, 2
    %v85 = vadd.f32 %v83, %v84
    %v86 = vrot.slane %v85, 1
    %v87 = vadd.f32 %v85, %v86
    %v88 = vmul.f32 %v87, 0.125
    %v89 = vadd.f32 %v88, 0.001
    %v90 = vrsqrt.pop %v89
    %v91 = vld [vmem:[%s2] sm:$0x1]
    %v92 = vmul.f32 %v91, %v90
    %v93 = vld [vmem:[%s3] sm:$0x1]
    %v94 = vmul.f32 %v79, %v92
    %v95 = vsub.f32 %v93, %v94
    %v97 = vlaneseq
    %v98 = vshrl.u32 %v97, 7
    %v99 = vsub.s32 0, %v98
    %v100 = vrot.slane %v92, %v99
    %v102 = vmul.f32 %v72, %v100
    %v104 = vlaneseq
    %v105 = vshrl.u32 %v104, 7
    %v106 = vsub.s32 0, %v105
    %v107 = vrot.slane %v95, %v106
    %v109 = vadd.f32 %v102, %v107
    %110 = vst [vmem:[#allocation4] sm:$0xff] %v109
    %v111 = vld [vmem:[%s55] sm:$0x1]
    %v112 = vmul.f32 %v111, 0.9
    %v113 = vmul.f32 %v79, 0.1
    %v114 = vadd.f32 %v112, %v113
    %115 = vst [vmem:[%s65] sm:$0x1] %v114
    %v116 = vld [vmem:[%s60] sm:$0x1]
    %v117 = vmul.f32 %v116, 0.9
    %v118 = vmul.f32 %v88, 1.1428572
    %v119 = vmul.f32 %v118, 0.1
    %v120 = vadd.f32 %v117, %v119
    %121 = vst [vmem:[%s70] sm:$0x1] %v120
    %s122 = sld [smem:[#allocation3]]
    %p123 = scmp.lt.s32.totalorder %s122, 7
    %s124 = scalar_select %p123, %s122, 7
    %s125 = scalar_lea.vmem %s7, %s124
    %s126 = sld [smem:[#allocation3]]
    %p127 = scmp.lt.s32.totalorder %s126, 7
    %s128 = scalar_select %p127, %s126, 7
    %s129 = scalar_lea.vmem %s8, %s128
    // Predicated region
    $region22: #{separated_batch_norm_1d.1} parent=1 // pred_check
      _
    $region23: #{separated_batch_norm_1d.1} parent=1 // pred_check_branch
      %131 = sbr.rel (0) target = $region25
    $region24: #{separated_batch_norm_1d.1} parent=1 // pred_region
      %s133 = ssub.s32 128, 128
      %134 = vsyncadd [#allocation5], %s133
      %s136 = sshll.u32 [#allocation4], 4
      %s137 = int_to_ptr.vmem [resolvable:$true] %s136
      %139 = dma.vmem_to_hbm [thread:$0]  %s137, 128, %s6, [#allocation5]
    $region25: #{separated_batch_norm_1d.1} parent=1 // pred_fallthru
      _
    // Predicated region
    $region26: #{separated_batch_norm_1d.1} parent=1 // pred_check
      _
    $region27: #{separated_batch_norm_1d.1} parent=1 // pred_check_branch
      %141 = sbr.rel (0) target = $region29
    $region28: #{separated_batch_norm_1d.1} parent=1 // pred_region
      %s142 = sld [smem:[#allocation3]]
    $region29: #{separated_batch_norm_1d.1} parent=1 // pred_fallthru
      _
    // Predicated region
    $region30: #{separated_batch_norm_1d.1} parent=1 // pred_check
      _
    $region31: #{separated_batch_norm_1d.1} parent=1 // pred_check_branch
      %144 = sbr.rel (0) target = $region33
    $region32: #{separated_batch_norm_1d.1} parent=1 // pred_region
      %s145 = sld [smem:[#allocation3]]
    $region33: #{separated_batch_norm_1d.1} parent=1 // pred_fallthru
      _
    // Predicated region
    $region34: #{separated_batch_norm_1d.1} parent=1 // pred_check
      _
    $region35: #{separated_batch_norm_1d.1} parent=1 // pred_check_branch
      %147 = sbr.rel (0) target = $region37
    $region36: #{separated_batch_norm_1d.1} parent=1 // pred_region
      %148 = dma.done [#allocation5], 128
    $region37: #{separated_batch_norm_1d.1} parent=1 // pred_fallthru
      _
    // Predicated region
    $region38: #{separated_batch_norm_1d.1} parent=1 // pred_check
      _
    $region39: #{separated_batch_norm_1d.1} parent=1 // pred_check_branch
      %150 = sbr.rel (0) target = $region41
    $region40: #{separated_batch_norm_1d.1} parent=1 // pred_region
      %s151 = sld [smem:[#allocation3]]
      %p152 = scmp.lt.s32.totalorder %s151, 7
      %s153 = scalar_select %p152, %s151, 7
      %s154 = scalar_lea.vmem %s7, %s153
    $region41: #{separated_batch_norm_1d.1} parent=1 // pred_fallthru
      _
    // Predicated region
    $region42: #{separated_batch_norm_1d.1} parent=1 // pred_check
      _
    $region43: #{separated_batch_norm_1d.1} parent=1 // pred_check_branch
      %156 = sbr.rel (0) target = $region45
    $region44: #{separated_batch_norm_1d.1} parent=1 // pred_region
      %s157 = sld [smem:[#allocation3]]
      %p158 = scmp.lt.s32.totalorder %s157, 7
      %s159 = scalar_select %p158, %s157, 7
      %s160 = scalar_lea.vmem %s8, %s159
    $region45: #{separated_batch_norm_1d.1} parent=1 // pred_fallthru
      _
    %161 = vsyncpa [#allocation5], 1

</llo_original>
